<compile_context>
chip_gen: v6e
topology: v6e:2x2x1
jax: 0.10.0
libtpu: 0.0.40
codegen_flags: <defaults>
</compile_context>

<pallas_src>
import jax
import jax.numpy as jnp
from jax.experimental import pallas as pl
from jax.experimental.pallas import tpu as pltpu


def _round_up(v, m):
    return ((v + m - 1) // m) * m


def _lr_kernel(b_ref, x_ref, w_ref, o_ref):
    # x_ref: (TB, Fp) VMEM, w_ref: (1, Fp) VMEM (lane-dense), b_ref: (1,) SMEM.
    # Lane-dense VPU multiply + reduce instead of a degenerate N=1 MXU matvec.
    x = x_ref[...].astype(jnp.float32)
    w = w_ref[...].astype(jnp.float32)               # broadcasts over sublanes
    logits = jnp.sum(x * w, axis=-1, keepdims=True) + b_ref[0]
    o_ref[...] = jax.nn.sigmoid(logits).astype(o_ref.dtype)


def lr_forward(x, weight, bias, *, block_b=None):
    """sigmoid(x @ weight.T + bias), matching torch.nn.Linear(n_features, 1).

    Args:
      x:      (B, F) float32
      weight: (1, F) float32  (torch nn.Linear weight layout)
      bias:   (1,)   float32
    Returns:
      (B, 1) float32
    """
    B, F = x.shape
    assert weight.shape == (1, F), weight.shape
    assert bias.shape == (1,), bias.shape

    # Lane-align F to 128 (zero padding contributes 0 to the dot product).
    Fp = _round_up(F, 128)

    # Batch tile: large enough to amortize per-grid-step overhead and approach
    # the HBM roofline, small enough that double-buffered f32 x tiles stay well
    # under v7x's 64 MiB physical VMEM.  Always a multiple of 8 (sublane).
    if block_b is None:
        tb = (8 * 1024 * 1024) // (Fp * 4)           # ~8 MiB f32 x-tile target
        tb = max(8, min(1024, _round_up(tb, 8) if tb >= 8 else 8))
        block_b = min(tb, _round_up(B, 8))
    block_b = _round_up(block_b, 8)
    Bp = _round_up(B, block_b)

    x_p = x
    if Bp != B or Fp != F:
        x_p = jnp.pad(x, ((0, Bp - B), (0, Fp - F)))
    w_p = weight if Fp == F else jnp.pad(weight, ((0, 0), (0, Fp - F)))

    grid = (Bp // block_b,)

    # Explicit VMEM budget: double-buffered x tile + weight/output + slack.
    tile_bytes = block_b * Fp * 4
    vmem_limit = int(min(max(4 * tile_bytes + (2 << 20), 16 * 1024 * 1024),
                         48 * 1024 * 1024))

    out = pl.pallas_call(
        _lr_kernel,
        out_shape=jax.ShapeDtypeStruct((Bp, 1), jnp.float32),
        grid_spec=pl.GridSpec(
            grid=grid,
            in_specs=[
                pl.BlockSpec(memory_space=pltpu.SMEM),            # bias scalar
                pl.BlockSpec((block_b, Fp), lambda i: (i, 0)),    # x batch tile
                pl.BlockSpec((1, Fp), lambda i: (0, 0)),          # weight (resident)
            ],
            out_specs=pl.BlockSpec((block_b, 1), lambda i: (i, 0)),
        ),
        compiler_params=pltpu.CompilerParams(
            dimension_semantics=("parallel",),   # independent rows -> megacore on v7x
            vmem_limit_bytes=vmem_limit,
        ),
        cost_estimate=pl.CostEstimate(
            flops=2 * B * F,
            transcendentals=B,
            bytes_accessed=4 * (B * F + F + B + 1),
        ),
    )(bias, x_p, w_p)

    return out[:B] if Bp != B else out


if __name__ == "__main__":
    key = jax.random.PRNGKey(0)
    kx, kw, kb, kx2 = jax.random.split(key, 4)

    # Small shapes consistent with the module: batch=8, n_features=32.
    B, F = 8, 32
    x = jax.random.normal(kx, (B, F), dtype=jnp.float32)

    # Deterministic parameter init mimicking torch.nn.Linear default:
    # uniform(-1/sqrt(F), 1/sqrt(F)) for both weight and bias.
    bound = 1.0 / jnp.sqrt(jnp.float32(F))
    weight = jax.random.uniform(kw, (1, F), jnp.float32, -bound, bound)
    bias = jax.random.uniform(kb, (1,), jnp.float32, -bound, bound)

    out = jax.block_until_ready(lr_forward(x, weight, bias))
    ref = jax.nn.sigmoid(x @ weight.T + bias)
    assert out.shape == (B, 1), out.shape
    assert jnp.allclose(out, ref, atol=1e-6, rtol=1e-5), "mismatch vs reference (small)"

    # Also exercise the tiled, multi-grid-step pipelined path.
    B2 = 2048
    x2 = jax.random.normal(kx2, (B2, F), dtype=jnp.float32)
    out2 = jax.block_until_ready(lr_forward(x2, weight, bias))
    ref2 = jax.nn.sigmoid(x2 @ weight.T + bias)
    assert out2.shape == (B2, 1), out2.shape
    assert jnp.allclose(out2, ref2, atol=1e-6, rtol=1e-5), "mismatch vs reference (tiled)"

    print("KERNEL_OK")
</pallas_src>

<mosaic_0001>
module attributes {stable_mosaic.version = 11 : i64} {
  func.func @_lr_kernel(%arg0: i32, %arg1: memref<1xf32, #tpu.memory_space<smem>>, %arg2: memref<8x128xf32, #tpu.memory_space<vmem>>, %arg3: memref<1x128xf32, #tpu.memory_space<vmem>>, %arg4: memref<8x1xf32, #tpu.memory_space<vmem>>) attributes {dimension_semantics = [#tpu.dimension_semantics<parallel>], iteration_bounds = array<i64: 1>, scalar_prefetch = 0 : i64, scratch_operands = 0 : i64, tpu.core_type = #tpu.core_type<tc>, window_params = [{transform_indices = @transform_0, window_bounds = array<i64: 1>}, {transform_indices = @transform_1, window_bounds = array<i64: 8, 128>}, {pipeline_mode = #tpu.pipeline_mode<synchronous>, transform_indices = @transform_2, window_bounds = array<i64: 1, 128>}, {transform_indices = @transform_3, window_bounds = array<i64: 8, 1>}]} {
    %c0 = arith.constant 0 : index
    %c0_0 = arith.constant 0 : index
    %0 = vector.load %arg2[%c0, %c0_0] : memref<8x128xf32, #tpu.memory_space<vmem>>, vector<8x128xf32>
    %c0_1 = arith.constant 0 : index
    %c0_2 = arith.constant 0 : index
    %1 = vector.load %arg3[%c0_1, %c0_2] : memref<1x128xf32, #tpu.memory_space<vmem>>, vector<1x128xf32>
    %2 = vector.broadcast %1 : vector<1x128xf32> to vector<8x128xf32>
    %3 = arith.mulf %0, %2 : vector<8x128xf32>
    %cst = arith.constant dense<0.000000e+00> : vector<8xf32>
    %4 = vector.multi_reduction <add>, %3, %cst [1] : vector<8x128xf32> to vector<8xf32>
    %5 = vector.shape_cast %4 : vector<8xf32> to vector<8x1xf32>
    %c0_3 = arith.constant 0 : index
    %6 = memref.load %arg1[%c0_3] : memref<1xf32, #tpu.memory_space<smem>>
    %7 = vector.broadcast %6 : f32 to vector<8x1xf32>
    %8 = arith.addf %5, %7 : vector<8x1xf32>
    %9 = arith.negf %8 : vector<8x1xf32>
    %10 = math.exp %9 : vector<8x1xf32>
    %cst_4 = arith.constant 1.000000e+00 : f32
    %11 = vector.broadcast %cst_4 : f32 to vector<8x1xf32>
    %12 = arith.addf %11, %10 : vector<8x1xf32>
    %13 = arith.divf %11, %12 : vector<8x1xf32>
    %c0_5 = arith.constant 0 : index
    %c0_6 = arith.constant 0 : index
    %14 = vector.load %arg4[%c0_5, %c0_6] : memref<8x1xf32, #tpu.memory_space<vmem>>, vector<8x1xf32>
    tpu.vector_store %arg4[%c0_5, %c0_6], %13 {strides = array<i32>} : memref<8x1xf32, #tpu.memory_space<vmem>>, vector<8x1xf32>,
    return
  }
  func.func @transform_0(%arg0: i32) -> i32 {
    %c0_i32 = arith.constant 0 : i32
    %c0_i32_0 = arith.constant 0 : i32
    return %c0_i32 : i32
  }
  func.func @transform_1(%arg0: i32) -> (i32, i32) {
    %c0_i32 = arith.constant 0 : i32
    %c0_i32_0 = arith.constant 0 : i32
    return %arg0, %c0_i32 : i32, i32
  }
  func.func @transform_2(%arg0: i32) -> (i32, i32) {
    %c0_i32 = arith.constant 0 : i32
    %c0_i32_0 = arith.constant 0 : i32
    %c0_i32_1 = arith.constant 0 : i32
    return %c0_i32, %c0_i32_0 : i32, i32
  }
  func.func @transform_3(%arg0: i32) -> (i32, i32) {
    %c0_i32 = arith.constant 0 : i32
    %c0_i32_0 = arith.constant 0 : i32
    return %arg0, %c0_i32 : i32, i32
  }
}

</mosaic_0001>

<llo_original>
// kernel: tpu_custom_call.1
$region0: #{tpu_custom_call.1}
  #allocation0 [shape = 'u32[]', space=smem, size = 0x4, offset = 0x4, fixed_abs, tag = 'smem constant byte address 0x4 - core index']
  #allocation1 [shape = 'u32[144,128]{1,0:T(1,128)}', space=vmem, size = 0x12000, scoped, tag = 'internal scratch']
  #allocation2 [shape = 'f32[1]{0:T(128)S(6)}', space=smem, size = 0x200, scoped, tag = 'scoped memory for tpu_custom_call.1']
  %s0 = inlined_call_operand.<no memory space> [shape: f32[1], index: 0, kind: input, shape index: {}]
  %s1 = inlined_call_operand.hbm [shape: f32[8,128], index: 1, kind: input, shape index: {}]
  %s2 = inlined_call_operand.vmem [shape: f32[1,128], index: 2, kind: input, shape index: {}]
  %s3 = inlined_call_operand.vmem [shape: f32[8,1], index: 3, kind: output, shape index: {}]
  %s4 = sld [smem:[#allocation0]]
  $region26: #{tpu_custom_call.1} parent=0
    _
  %s6 = ssub.s32 1, %s4
  %s7 = scalar_select 0, %s6, %s4
  %8 = sst [smem:[#allocation2]] %s0
  $region1: #{tpu_custom_call.1} parent=0
    #allocation3 [shape = 'u8[4096]{0}', space=vmem, size = 0x1000, scoped, tag = 'input window, operand 1, single buffered']
    #allocation4 [shape = 's32[1]{0}', space=sflag, size = 0x4, scoped, tag = 'scoped memory for tpu_custom_call.1']
    %9 = vsyncpa [#allocation4], 0
    // Predicated region
    $region2: #{tpu_custom_call.1} parent=1 // pred_check
      _
    $region3: #{tpu_custom_call.1} parent=1 // pred_check_branch
      %11 = sbr.rel (0) target = $region5
    $region4: #{tpu_custom_call.1} parent=1 // pred_region
      _
    $region5: #{tpu_custom_call.1} parent=1 // pred_fallthru
      _
    // Predicated region
    $region6: #{tpu_custom_call.1} parent=1 // pred_check
      _
    $region7: #{tpu_custom_call.1} parent=1 // pred_check_branch
      %13 = sbr.rel (0) target = $region9
    $region8: #{tpu_custom_call.1} parent=1 // pred_region
      %s15 = ssub.s32 128, 128
      %16 = vsyncadd [#allocation4], %s15
      %s18 = sshll.u32 [#allocation3], 4
      %s19 = int_to_ptr.vmem [resolvable:$true] %s18
      %21 = dma.hbm_to_vmem [thread:$0]  %s1, 128, %s19, [#allocation4]
    $region9: #{tpu_custom_call.1} parent=1 // pred_fallthru
      _
    // Predicated region
    $region10: #{tpu_custom_call.1} parent=1 // pred_check
      _
    $region11: #{tpu_custom_call.1} parent=1 // pred_check_branch
      %23 = sbr.rel (0) target = $region13
    $region12: #{tpu_custom_call.1} parent=1 // pred_region
      _
    $region13: #{tpu_custom_call.1} parent=1 // pred_fallthru
      _
    // Predicated region
    $region14: #{tpu_custom_call.1} parent=1 // pred_check
      _
    $region15: #{tpu_custom_call.1} parent=1 // pred_check_branch
      %25 = sbr.rel (0) target = $region17
    $region16: #{tpu_custom_call.1} parent=1 // pred_region
      %26 = dma.done [#allocation4], 128
    $region17: #{tpu_custom_call.1} parent=1 // pred_fallthru
      _
    %v27 = vld [vmem:[#allocation3] sm:$0xff]
    %v28 = vld [vmem:[%s2] sm:$0x1]
    %v30 = vlaneseq
    %v31 = vshrl.u32 %v30, 7
    %v32 = vsub.s32 0, %v31
    %v33 = vrot.slane %v28, %v32
    %v35 = vmul.f32 %v27, %v33
    %36 = vadd.xlane.f32.xlu0 %v35
    %v37 = vpop.xlane.xlu0 %36
    %s38 = sld [smem:[#allocation2]]
    %v39 = vstv %s38
    %v40 = vadd.f32 %v37, %v39
    %v41 = vxor.u32 %v40, 2147483648
    %v42 = vmul.f32 %v41, 1.442695
    %v43 = vpow.pop %v42
    %v44 = vadd.f32 %v43, 1.0
    %v45 = vrcp.pop %v44
    %v46 = vmul.f32 1.0, %v45
    %vm47 = vcmask 7168
    %48 = vst.msk [vmem:[%s3] sm:$0xff] %vm47, %v46
    // Predicated region
    $region18: #{tpu_custom_call.1} parent=1 // pred_check
      _
    $region19: #{tpu_custom_call.1} parent=1 // pred_check_branch
      %50 = sbr.rel (0) target = $region21
    $region20: #{tpu_custom_call.1} parent=1 // pred_region
      _
    $region21: #{tpu_custom_call.1} parent=1 // pred_fallthru
      _
    // Predicated region
    $region22: #{tpu_custom_call.1} parent=1 // pred_check
      _
    $region23: #{tpu_custom_call.1} parent=1 // pred_check_branch
      %52 = sbr.rel (0) target = $region25
    $region24: #{tpu_custom_call.1} parent=1 // pred_region
      _
    $region25: #{tpu_custom_call.1} parent=1 // pred_fallthru
      _
    %53 = vsyncpa [#allocation4], 1

</llo_original>
